<compile_context>
chip_gen: v7x
topology: tpu7x:2x2x1
jax: 0.10.0
libtpu: 0.0.40
codegen_flags: <defaults>
</compile_context>

<pallas_src>
import functools

import jax
import jax.numpy as jnp
from jax.experimental import pallas as pl
from jax.experimental.pallas import tpu as pltpu


def _dwindow_max_kernel(x_ref, y_ref):
    # x_ref: (TG, k, L) block — depth-window axis is axis 1.
    # y_ref: (TG, L)    block — lane/sublane-dense output tile.
    k = x_ref.shape[1]
    acc = x_ref[:, 0, :]
    for j in range(1, k):                      # tiny static unroll (j < k)
        acc = jnp.maximum(acc, x_ref[:, j, :])
    y_ref[...] = acc


def _pick_block_rows(G, k, L, itemsize, budget_bytes=10 * 1024 * 1024):
    """Pick TG (rows per block) and padded G.

    Conservative VMEM estimate per TG row: one input row (k, L) padded to the
    (8, 128) tile grid plus one output row (L padded to 128 lanes), times 2
    for double buffering.  Prefer the largest divisor of G that is a multiple
    of 8 (dense output sublanes, no padding of G needed).
    """
    kp = -(-k // 8) * 8
    lp = -(-L // 128) * 128
    per_row = 2 * (kp * lp + lp) * itemsize
    cap = max(1, budget_bytes // per_row)

    best = 0
    i = 1
    while i * i <= G:
        if G % i == 0:
            for d in (i, G // i):
                if d <= cap and (d % 8 == 0 or d == G) and d > best:
                    best = d
        i += 1
    if best:
        return best, G                          # no padding of G needed

    # Fallback (G has no suitable divisor): pad G up to a multiple of TG.
    tg = max(8, (cap // 8) * 8)
    tg = min(tg, -(-G // 8) * 8)
    Gp = -(-G // tg) * tg
    return tg, Gp


def bmaxpool3d(x, kernel_size):
    """Forward of BMaxPool(kernel_size, dim=3): returns (maxpool3d(x), 0)."""
    k = int(kernel_size)
    N, C, D, H, W = x.shape
    # PyTorch MaxPool3d defaults: stride == kernel_size, padding=0, floor mode.
    Do, Ho, Wo = D // k, H // k, W // k
    if (Do * k, Ho * k, Wo * k) != (D, H, W):
        x = x[:, :, :Do * k, :Ho * k, :Wo * k]

    # Stage 1 (XLA, single fused pass, no transpose, no pad): reduce the H- and
    # W-window axes (the two minor window axes).  Reads x once, writes x/k^2.
    # TODO(synk): a k-strided lane-window max has no robust in-kernel Pallas
    # TPU lowering (lane-strided loads unsupported), so these two minor-axis
    # window reductions stay in XLA; the depth-window reduce below is Pallas.
    xhw = x.reshape(N, C, Do, k, Ho, k, Wo, k).max(axis=(5, 7))  # (N,C,Do,k,Ho,Wo)

    # Stage 2 (Pallas): depth-window max on large contiguous lane-dense blocks.
    G = N * C * Do
    L = Ho * Wo
    xg = xhw.reshape(G, k, L)          # free regrouping of contiguous dims

    TG, Gp = _pick_block_rows(G, k, L, x.dtype.itemsize)
    if Gp != G:
        # Rare ragged case: padded rows are junk and are sliced off below.
        xg = jnp.pad(xg, ((0, Gp - G), (0, 0), (0, 0)))

    out = pl.pallas_call(
        _dwindow_max_kernel,
        out_shape=jax.ShapeDtypeStruct((Gp, L), x.dtype),
        grid_spec=pltpu.PrefetchScalarGridSpec(
            num_scalar_prefetch=0,
            grid=(Gp // TG,),
            in_specs=[pl.BlockSpec((TG, k, L), lambda g: (g, 0, 0))],
            out_specs=pl.BlockSpec((TG, L), lambda g: (g, 0)),
        ),
        compiler_params=pltpu.CompilerParams(
            dimension_semantics=("parallel",),
            vmem_limit_bytes=32 * 1024 * 1024,
        ),
    )(xg)

    if Gp != G:
        out = out[:G]
    y = out.reshape(N, C, Do, Ho, Wo)
    # BMaxPool has self.fixed = False, so forward returns (y, 0).
    return y, 0


if __name__ == "__main__":
    key = jax.random.PRNGKey(0)
    # NCDHW input (dim=3 MaxPool), small shapes.
    x = jax.random.normal(key, (2, 4, 8, 8, 8), dtype=jnp.float32)
    kernel_size = 2

    fwd = jax.jit(functools.partial(bmaxpool3d, kernel_size=kernel_size))
    y, kl = fwd(x)
    y = jax.block_until_ready(y)

    # Pure-JAX reference check.
    N, C, D, H, W = x.shape
    k = kernel_size
    ref = x.reshape(N, C, D // k, k, H // k, k, W // k, k).max(axis=(3, 5, 7))
    assert y.shape == (N, C, D // k, H // k, W // k)
    assert jnp.allclose(y, ref)
    assert int(kl) == 0

    print("KERNEL_OK")
</pallas_src>

<mosaic_0001>
module attributes {stable_mosaic.version = 11 : i64} {
  func.func @_dwindow_max_kernel(%arg0: i32, %arg1: memref<32x2x16xf32, #tpu.memory_space<vmem>>, %arg2: memref<32x16xf32, #tpu.memory_space<vmem>>) attributes {dimension_semantics = [#tpu.dimension_semantics<parallel>], iteration_bounds = array<i64: 1>, scalar_prefetch = 0 : i64, scratch_operands = 0 : i64, tpu.core_type = #tpu.core_type<tc>, window_params = [{transform_indices = @transform_0, window_bounds = array<i64: 32, 2, 16>}, {transform_indices = @transform_1, window_bounds = array<i64: 32, 16>}]} {
    %c0 = arith.constant 0 : index
    %c0_0 = arith.constant 0 : index
    %c0_1 = arith.constant 0 : index
    %0 = vector.load %arg1[%c0, %c0_0, %c0_1] : memref<32x2x16xf32, #tpu.memory_space<vmem>>, vector<32x1x16xf32>
    %1 = vector.shape_cast %0 : vector<32x1x16xf32> to vector<32x16xf32>
    %c0_2 = arith.constant 0 : index
    %c1 = arith.constant 1 : index
    %c0_3 = arith.constant 0 : index
    %2 = vector.load %arg1[%c0_2, %c1, %c0_3] : memref<32x2x16xf32, #tpu.memory_space<vmem>>, vector<32x1x16xf32>
    %3 = vector.shape_cast %2 : vector<32x1x16xf32> to vector<32x16xf32>
    %4 = arith.maximumf %1, %3 : vector<32x16xf32>
    %c0_4 = arith.constant 0 : index
    %c0_5 = arith.constant 0 : index
    %5 = vector.load %arg2[%c0_4, %c0_5] : memref<32x16xf32, #tpu.memory_space<vmem>>, vector<32x16xf32>
    tpu.vector_store %arg2[%c0_4, %c0_5], %4 {strides = array<i32>} : memref<32x16xf32, #tpu.memory_space<vmem>>, vector<32x16xf32>,
    return
  }
  func.func @transform_0(%arg0: i32) -> (i32, i32, i32) {
    %c0_i32 = arith.constant 0 : i32
    %c0_i32_0 = arith.constant 0 : i32
    %c0_i32_1 = arith.constant 0 : i32
    return %arg0, %c0_i32, %c0_i32_0 : i32, i32, i32
  }
  func.func @transform_1(%arg0: i32) -> (i32, i32) {
    %c0_i32 = arith.constant 0 : i32
    %c0_i32_0 = arith.constant 0 : i32
    return %arg0, %c0_i32 : i32, i32
  }
}

</mosaic_0001>

<llo_original>
// kernel: bmaxpool3d.1
$region0: #{bmaxpool3d.1}
  #allocation0 [shape = 'u32[]', space=smem, size = 0x4, offset = 0x4, fixed_abs, tag = 'smem constant byte address 0x4 - core index']
  #allocation1 [shape = 'u32[144,128]{1,0:T(1,128)}', space=vmem, size = 0x12000, scoped, tag = 'internal scratch']
  %s0 = inlined_call_operand.vmem [shape: f32[32,2,16], index: 0, kind: input, shape index: {}]
  %s1 = inlined_call_operand.vmem [shape: f32[32,16], index: 1, kind: output, shape index: {}]
  %s2 = sld [smem:[#allocation0]]
  $region14: #{bmaxpool3d.1} parent=0
    _
  %s4 = ssub.s32 1, %s2
  %s5 = scalar_select 0, %s4, %s2
  // Predicated region
  $region2: #{bmaxpool3d.1} parent=0 // pred_check
    _
  $region3: #{bmaxpool3d.1} parent=0 // pred_check_branch
    %7 = sbr.rel (0) target = $region5
  $region4: #{bmaxpool3d.1} parent=0 // pred_region
    _
  $region5: #{bmaxpool3d.1} parent=0 // pred_fallthru
    _
  %v8 = vld [vmem:[%s0] sm:$0x1]
  %v9 = vld [vmem:[%s0 + $0x2] sm:$0x1]
  %v10 = vld [vmem:[%s0 + $0x4] sm:$0x1]
  %v11 = vld [vmem:[%s0 + $0x6] sm:$0x1]
  %v12 = vld [vmem:[%s0 + $0x8] sm:$0x1]
  %v13 = vld [vmem:[%s0 + $0xa] sm:$0x1]
  %v14 = vld [vmem:[%s0 + $0xc] sm:$0x1]
  %v15 = vld [vmem:[%s0 + $0xe] sm:$0x1]
  %v16 = vld [vmem:[%s0 + $0x10] sm:$0x1]
  %v17 = vld [vmem:[%s0 + $0x12] sm:$0x1]
  %v18 = vld [vmem:[%s0 + $0x14] sm:$0x1]
  %v19 = vld [vmem:[%s0 + $0x16] sm:$0x1]
  %v20 = vld [vmem:[%s0 + $0x18] sm:$0x1]
  %v21 = vld [vmem:[%s0 + $0x1a] sm:$0x1]
  %v22 = vld [vmem:[%s0 + $0x1c] sm:$0x1]
  %v23 = vld [vmem:[%s0 + $0x1e] sm:$0x1]
  %v24 = vld [vmem:[%s0 + $0x20] sm:$0x1]
  %v25 = vld [vmem:[%s0 + $0x22] sm:$0x1]
  %v26 = vld [vmem:[%s0 + $0x24] sm:$0x1]
  %v27 = vld [vmem:[%s0 + $0x26] sm:$0x1]
  %v28 = vld [vmem:[%s0 + $0x28] sm:$0x1]
  %v29 = vld [vmem:[%s0 + $0x2a] sm:$0x1]
  %v30 = vld [vmem:[%s0 + $0x2c] sm:$0x1]
  %v31 = vld [vmem:[%s0 + $0x2e] sm:$0x1]
  %v32 = vld [vmem:[%s0 + $0x30] sm:$0x1]
  %v33 = vld [vmem:[%s0 + $0x32] sm:$0x1]
  %v34 = vld [vmem:[%s0 + $0x34] sm:$0x1]
  %v35 = vld [vmem:[%s0 + $0x36] sm:$0x1]
  %v36 = vld [vmem:[%s0 + $0x38] sm:$0x1]
  %v37 = vld [vmem:[%s0 + $0x3a] sm:$0x1]
  %v38 = vld [vmem:[%s0 + $0x3c] sm:$0x1]
  %v39 = vld [vmem:[%s0 + $0x3e] sm:$0x1]
  %v40 = vld [vmem:[%s0 + $0x1] sm:$0x1]
  %v41 = vld [vmem:[%s0 + $0x3] sm:$0x1]
  %v42 = vld [vmem:[%s0 + $0x5] sm:$0x1]
  %v43 = vld [vmem:[%s0 + $0x7] sm:$0x1]
  %v44 = vld [vmem:[%s0 + $0x9] sm:$0x1]
  %v45 = vld [vmem:[%s0 + $0xb] sm:$0x1]
  %v46 = vld [vmem:[%s0 + $0xd] sm:$0x1]
  %v47 = vld [vmem:[%s0 + $0xf] sm:$0x1]
  %v48 = vld [vmem:[%s0 + $0x11] sm:$0x1]
  %v49 = vld [vmem:[%s0 + $0x13] sm:$0x1]
  %v50 = vld [vmem:[%s0 + $0x15] sm:$0x1]
  %v51 = vld [vmem:[%s0 + $0x17] sm:$0x1]
  %v52 = vld [vmem:[%s0 + $0x19] sm:$0x1]
  %v53 = vld [vmem:[%s0 + $0x1b] sm:$0x1]
  %v54 = vld [vmem:[%s0 + $0x1d] sm:$0x1]
  %v55 = vld [vmem:[%s0 + $0x1f] sm:$0x1]
  %v56 = vld [vmem:[%s0 + $0x21] sm:$0x1]
  %v57 = vld [vmem:[%s0 + $0x23] sm:$0x1]
  %v58 = vld [vmem:[%s0 + $0x25] sm:$0x1]
  %v59 = vld [vmem:[%s0 + $0x27] sm:$0x1]
  %v60 = vld [vmem:[%s0 + $0x29] sm:$0x1]
  %v61 = vld [vmem:[%s0 + $0x2b] sm:$0x1]
  %v62 = vld [vmem:[%s0 + $0x2d] sm:$0x1]
  %v63 = vld [vmem:[%s0 + $0x2f] sm:$0x1]
  %v64 = vld [vmem:[%s0 + $0x31] sm:$0x1]
  %v65 = vld [vmem:[%s0 + $0x33] sm:$0x1]
  %v66 = vld [vmem:[%s0 + $0x35] sm:$0x1]
  %v67 = vld [vmem:[%s0 + $0x37] sm:$0x1]
  %v68 = vld [vmem:[%s0 + $0x39] sm:$0x1]
  %v69 = vld [vmem:[%s0 + $0x3b] sm:$0x1]
  %v70 = vld [vmem:[%s0 + $0x3d] sm:$0x1]
  %v71 = vld [vmem:[%s0 + $0x3f] sm:$0x1]
  %v72 = vmax.f32 %v8, %v40
  %v73 = vmax.f32 %v9, %v41
  %v74 = vmax.f32 %v10, %v42
  %v75 = vmax.f32 %v11, %v43
  %v76 = vmax.f32 %v12, %v44
  %v77 = vmax.f32 %v13, %v45
  %v78 = vmax.f32 %v14, %v46
  %v79 = vmax.f32 %v15, %v47
  %v80 = vmax.f32 %v16, %v48
  %v81 = vmax.f32 %v17, %v49
  %v82 = vmax.f32 %v18, %v50
  %v83 = vmax.f32 %v19, %v51
  %v84 = vmax.f32 %v20, %v52
  %v85 = vmax.f32 %v21, %v53
  %v86 = vmax.f32 %v22, %v54
  %v87 = vmax.f32 %v23, %v55
  %v88 = vmax.f32 %v24, %v56
  %v89 = vmax.f32 %v25, %v57
  %v90 = vmax.f32 %v26, %v58
  %v91 = vmax.f32 %v27, %v59
  %v92 = vmax.f32 %v28, %v60
  %v93 = vmax.f32 %v29, %v61
  %v94 = vmax.f32 %v30, %v62
  %v95 = vmax.f32 %v31, %v63
  %v96 = vmax.f32 %v32, %v64
  %v97 = vmax.f32 %v33, %v65
  %v98 = vmax.f32 %v34, %v66
  %v99 = vmax.f32 %v35, %v67
  %v100 = vmax.f32 %v36, %v68
  %v101 = vmax.f32 %v37, %v69
  %v102 = vmax.f32 %v38, %v70
  %v103 = vmax.f32 %v39, %v71
  %v136 = vrot.slane %v73, 7
  %vm137 = vcmask 1041409
  %v138 = vsel %vm137, %v136, %v72
  %v139 = vrot.slane %v74, 6
  %vm140 = vcmask 1042434
  %v141 = vsel %vm140, %v139, %v138
  %v142 = vrot.slane %v75, 5
  %vm143 = vcmask 1043459
  %v144 = vsel %vm143, %v142, %v141
  %v145 = vrot.slane %v76, 4
  %vm146 = vcmask 1044484
  %v147 = vsel %vm146, %v145, %v144
  %v148 = vrot.slane %v77, 3
  %vm149 = vcmask 1045509
  %v150 = vsel %vm149, %v148, %v147
  %v151 = vrot.slane %v78, 2
  %vm152 = vcmask 1046534
  %v153 = vsel %vm152, %v151, %v150
  %v154 = vrot.slane %v79, 1
  %vm155 = vcmask 1047559
  %v156 = vsel %vm155, %v154, %v153
  %v157 = vrot.slane %v81, 7
  %v158 = vsel %vm137, %v157, %v80
  %v159 = vrot.slane %v82, 6
  %v160 = vsel %vm140, %v159, %v158
  %v161 = vrot.slane %v83, 5
  %v162 = vsel %vm143, %v161, %v160
  %v163 = vrot.slane %v84, 4
  %v164 = vsel %vm146, %v163, %v162
  %v165 = vrot.slane %v85, 3
  %v166 = vsel %vm149, %v165, %v164
  %v167 = vrot.slane %v86, 2
  %v168 = vsel %vm152, %v167, %v166
  %v169 = vrot.slane %v87, 1
  %v170 = vsel %vm155, %v169, %v168
  %v171 = vrot.slane %v89, 7
  %v172 = vsel %vm137, %v171, %v88
  %v173 = vrot.slane %v90, 6
  %v174 = vsel %vm140, %v173, %v172
  %v175 = vrot.slane %v91, 5
  %v176 = vsel %vm143, %v175, %v174
  %v177 = vrot.slane %v92, 4
  %v178 = vsel %vm146, %v177, %v176
  %v179 = vrot.slane %v93, 3
  %v180 = vsel %vm149, %v179, %v178
  %v181 = vrot.slane %v94, 2
  %v182 = vsel %vm152, %v181, %v180
  %v183 = vrot.slane %v95, 1
  %v184 = vsel %vm155, %v183, %v182
  %v185 = vrot.slane %v97, 7
  %v186 = vsel %vm137, %v185, %v96
  %v187 = vrot.slane %v98, 6
  %v188 = vsel %vm140, %v187, %v186
  %v189 = vrot.slane %v99, 5
  %v190 = vsel %vm143, %v189, %v188
  %v191 = vrot.slane %v100, 4
  %v192 = vsel %vm146, %v191, %v190
  %v193 = vrot.slane %v101, 3
  %v194 = vsel %vm149, %v193, %v192
  %v195 = vrot.slane %v102, 2
  %v196 = vsel %vm152, %v195, %v194
  %v197 = vrot.slane %v103, 1
  %v198 = vsel %vm155, %v197, %v196
  %vm203 = vcmask 130048
  %204 = vst.msk [vmem:[%s1] sm:$0xff] %vm203, %v156
  %205 = vst.msk [vmem:[%s1 + $0x8] sm:$0xff] %vm203, %v170
  %206 = vst.msk [vmem:[%s1 + $0x10] sm:$0xff] %vm203, %v184
  %207 = vst.msk [vmem:[%s1 + $0x18] sm:$0xff] %vm203, %v198
  // Predicated region
  $region6: #{bmaxpool3d.1} parent=0 // pred_check
    _
  $region7: #{bmaxpool3d.1} parent=0 // pred_check_branch
    %209 = sbr.rel (0) target = $region9
  $region8: #{bmaxpool3d.1} parent=0 // pred_region
    _
  $region9: #{bmaxpool3d.1} parent=0 // pred_fallthru
    _
  // Predicated region
  $region10: #{bmaxpool3d.1} parent=0 // pred_check
    _
  $region11: #{bmaxpool3d.1} parent=0 // pred_check_branch
    %211 = sbr.rel (0) target = $region13
  $region12: #{bmaxpool3d.1} parent=0 // pred_region
    _
  $region13: #{bmaxpool3d.1} parent=0 // pred_fallthru
    _

</llo_original>
